<compile_context>
chip_gen: v7x
topology: tpu7x:2x2x1
jax: 0.10.0
libtpu: 0.0.40
codegen_flags: <defaults>
</compile_context>

<pallas_src>
import functools
import math

import jax
import jax.numpy as jnp
from jax import lax
from jax.experimental import pallas as pl
from jax.experimental.pallas import tpu as pltpu


def _round_up(x, m):
    return ((x + m - 1) // m) * m


def _vmem_limit(nbytes):
    # Computed need + 25% + 2 MiB headroom, clamped to a sane range.
    return int(min(max(int(nbytes * 1.25) + (2 << 20), 16 << 20), 100 << 20))


# ---------------------------------------------------------------------------
# Kernel 1: scores[t, e] = sigmoid(x[t, :] . W[e, :])   (streamed over token tiles)
# ---------------------------------------------------------------------------
def _gate_scores_kernel(x_ref, w_ref, s_ref, *, n_tok, tm, grid_n, compute_dtype):
    xv = x_ref[...]
    wv = w_ref[...]
    if compute_dtype is not None:
        xv = xv.astype(compute_dtype)
        wv = wv.astype(compute_dtype)
    # Weight consumed in its native PyTorch (E, h) layout: contract on h.
    logits = lax.dot_general(
        xv, wv,
        dimension_numbers=(((1,), (1,)), ((), ())),
        preferred_element_type=jnp.float32)            # (tm, E_pad)
    scores = jax.nn.sigmoid(logits)
    s_ref[...] = scores
    if n_tok % tm != 0:
        # Only the last tile can be ragged: mask out-of-range tokens with a value (< 0)
        # that can never win the top-k.  Gated under pl.when so the iota/compare/select
        # is off the streaming path for every other tile.
        @pl.when(pl.program_id(0) == grid_n - 1)
        def _():
            tok = pl.program_id(0) * tm + lax.broadcasted_iota(
                jnp.int32, scores.shape, 0)
            s_ref[...] = jnp.where(tok < n_tok, scores, -1.0)


# ---------------------------------------------------------------------------
# Kernel 2: per-expert top-`capacity` tokens (iterative argmax with knock-out),
#           lane-dense (experts on sublanes, tokens on lanes).
# ---------------------------------------------------------------------------
def _ec_topk_kernel(scores_ref, ids_ref, vals_ref, st_ref, *, capacity, t_pad):
    e_blk = st_ref.shape[0]
    # Working copy (the knock-out mutates it `capacity` times).
    st_ref[...] = scores_ref[...]
    # Hoisted out of the selection loop (JAX does not CSE broadcast_in_dim).
    cols = lax.broadcasted_iota(jnp.int32, (e_blk, t_pad), 1)
    out_cols = lax.broadcasted_iota(jnp.int32, (e_blk, capacity), 1)

    def body(k, carry):
        ids_acc, vals_acc = carry
        st = st_ref[...]                                      # (e_blk, t_pad)
        m = jnp.max(st, axis=-1, keepdims=True)               # exact winning score (XLU)
        hit_cols = jnp.where(st == m, cols, t_pad)            # shared hit mask
        idx = jnp.min(hit_cols, axis=-1, keepdims=True)       # first argmax (ties: low idx)
        st_ref[...] = jnp.where(hit_cols == idx, -jnp.inf, st)  # knock out the winner only
        ids_acc = jnp.where(out_cols == k, idx, ids_acc)
        vals_acc = jnp.where(out_cols == k, m, vals_acc)
        return ids_acc, vals_acc

    ids0 = jnp.zeros((e_blk, capacity), jnp.int32)
    vals0 = jnp.zeros((e_blk, capacity), jnp.float32)
    ids_acc, vals_acc = lax.fori_loop(0, capacity, body, (ids0, vals0))
    ids_ref[...] = ids_acc
    vals_ref[...] = vals_acc.astype(vals_ref.dtype)


@functools.partial(jax.jit, static_argnames=("num_experts_per_tok", "block_tokens",
                                             "expert_block", "compute_dtype"))
def ec_moe_gate_forward(hidden_states, weight, *, num_experts_per_tok=2,
                        block_tokens=512, expert_block=8, compute_dtype=None):
    """ECMoEGate forward.

    hidden_states: (bsz, seq, h)
    weight:        (num_experts, h)    -- PyTorch nn.Linear [out, in] layout
    Returns (topk_ids, topk_score), each (num_experts, capacity).
    """
    bsz, seq_len, h = hidden_states.shape
    x2 = hidden_states.reshape(-1, h)
    n_tok = x2.shape[0]
    n_exp = weight.shape[0]

    # _capacity(scores, top_k): ceil(T / E * top_k)
    capacity = math.ceil(n_tok / n_exp * num_experts_per_tok)
    if capacity > n_tok:
        raise ValueError(
            f"capacity ({capacity}) > num_tokens ({n_tok}); torch.topk would fail too.")

    # Expert padding / blocking. Expert blocks are fully independent -> "parallel" grid
    # axis (uses both TensorCores on v7x) and small per-core VMEM footprint.
    e_blk = _round_up(min(expert_block, n_exp), 8)
    e_pad = _round_up(n_exp, e_blk)
    n_eblk = e_pad // e_blk
    w_pad = weight if e_pad == n_exp else jnp.pad(weight, ((0, e_pad - n_exp), (0, 0)))

    # Token tiling: single full block for small inputs, 128-aligned tiles otherwise.
    bt = max(128, _round_up(block_tokens, 128))
    if n_tok <= bt:
        tm, grid_n = n_tok, 1
    else:
        tm, grid_n = bt, pl.cdiv(n_tok, bt)
    t_pad = grid_n * tm

    x_bytes = jnp.dtype(x2.dtype).itemsize
    w_bytes = jnp.dtype(weight.dtype).itemsize

    # ---------------- Kernel 1: streaming gating matmul + sigmoid ----------------
    vmem1 = _vmem_limit(2 * tm * h * x_bytes + 2 * e_pad * h * w_bytes
                        + 2 * tm * e_pad * 4)
    cost1 = pl.CostEstimate(
        flops=2 * n_tok * h * e_pad,
        transcendentals=n_tok * e_pad,
        bytes_accessed=n_tok * h * x_bytes + e_pad * h * w_bytes + t_pad * e_pad * 4)

    scores_tm = pl.pallas_call(
        functools.partial(_gate_scores_kernel, n_tok=n_tok, tm=tm, grid_n=grid_n,
                          compute_dtype=compute_dtype),
        out_shape=jax.ShapeDtypeStruct((t_pad, e_pad), jnp.float32),
        grid_spec=pltpu.PrefetchScalarGridSpec(
            num_scalar_prefetch=0,
            grid=(grid_n,),
            in_specs=[
                pl.BlockSpec((tm, h), lambda i: (i, 0)),       # token tile
                # TODO(synk): single-buffer this resident weight (pl.Buffered(1)) once
                # pipeline_mode plumbing is verified on all targets; skipped for safety.
                pl.BlockSpec((e_pad, h), lambda i: (0, 0)),    # resident gate weight
            ],
            out_specs=pl.BlockSpec((tm, e_pad), lambda i: (i, 0)),
        ),
        compiler_params=pltpu.CompilerParams(
            dimension_semantics=("parallel",), vmem_limit_bytes=vmem1),
        cost_estimate=cost1,
    )(x2, w_pad)

    # Tiny (T, E) -> (E, T) relayout (a few MiB of HBM traffic at realistic sizes) so the
    # capacity-pass top-k sweeps are lane-dense even when E < 128.
    scores_em = scores_tm.T

    # ---------------- Kernel 2: expert-choice top-k ----------------
    vmem2 = _vmem_limit(4 * e_blk * t_pad * 4 + 8 * e_blk * capacity * 4)
    cost2 = pl.CostEstimate(
        flops=6 * capacity * e_pad * t_pad,
        transcendentals=0,
        bytes_accessed=e_pad * t_pad * 4 + 2 * e_pad * capacity * 4)

    ids_pad, vals_pad = pl.pallas_call(
        functools.partial(_ec_topk_kernel, capacity=capacity, t_pad=t_pad),
        out_shape=(
            jax.ShapeDtypeStruct((e_pad, capacity), jnp.int32),
            jax.ShapeDtypeStruct((e_pad, capacity), hidden_states.dtype),
        ),
        grid_spec=pltpu.PrefetchScalarGridSpec(
            num_scalar_prefetch=0,
            grid=(n_eblk,),
            in_specs=[pl.BlockSpec((e_blk, t_pad), lambda e: (e, 0))],
            out_specs=(
                pl.BlockSpec((e_blk, capacity), lambda e: (e, 0)),
                pl.BlockSpec((e_blk, capacity), lambda e: (e, 0)),
            ),
            scratch_shapes=[pltpu.VMEM((e_blk, t_pad), jnp.float32)],
        ),
        compiler_params=pltpu.CompilerParams(
            dimension_semantics=("parallel",), vmem_limit_bytes=vmem2),
        cost_estimate=cost2,
    )(scores_em)

    # TODO(synk): PyTorch returns int64 ids; int32 is sufficient for token indexing.
    # torch.topk(sorted=False) order is unspecified; descending order (ties -> lower
    # index first, matching lax.top_k) is returned here.
    return ids_pad[:n_exp], vals_pad[:n_exp]


def _reference_forward(hidden_states, weight, num_experts_per_tok):
    bsz, seq_len, h = hidden_states.shape
    x2 = hidden_states.reshape(-1, h)
    scores = jax.nn.sigmoid(x2 @ weight.T)                   # (T, E)
    n_tok, n_exp = scores.shape
    capacity = math.ceil(n_tok / n_exp * num_experts_per_tok)
    vals, ids = jax.lax.top_k(scores.T, capacity)            # (E, capacity)
    return ids, vals


if __name__ == "__main__":
    batch, seq = 2, 8
    embed_dim = 32
    num_experts = 16
    top_k = 2

    key = jax.random.PRNGKey(0)
    kx, kw = jax.random.split(key)

    x = jax.random.normal(kx, (batch, seq, embed_dim), dtype=jnp.float32)
    # Deterministic kaiming_uniform(a=sqrt(5))-style init: bound = 1/sqrt(fan_in).
    bound = 1.0 / math.sqrt(embed_dim)
    weight = jax.random.uniform(kw, (num_experts, embed_dim),
                                minval=-bound, maxval=bound, dtype=jnp.float32)

    ids, scores = ec_moe_gate_forward(x, weight, num_experts_per_tok=top_k)
    ids, scores = jax.block_until_ready((ids, scores))

    ref_ids, ref_vals = _reference_forward(x, weight, top_k)
    capacity = ref_ids.shape[-1]

    assert ids.shape == (num_experts, capacity), ids.shape
    assert scores.shape == (num_experts, capacity), scores.shape
    assert jnp.allclose(scores, ref_vals, atol=1e-5, rtol=1e-5), \
        float(jnp.max(jnp.abs(scores - ref_vals)))
    assert jnp.array_equal(ids, ref_ids), (ids, ref_ids)

    print("KERNEL_OK")
</pallas_src>

<mosaic_0001>
module attributes {stable_mosaic.version = 11 : i64} {
  func.func @_gate_scores_kernel(%arg0: i32, %arg1: memref<16x32xf32, #tpu.memory_space<vmem>>, %arg2: memref<16x32xf32, #tpu.memory_space<vmem>>, %arg3: memref<16x16xf32, #tpu.memory_space<vmem>>) attributes {dimension_semantics = [#tpu.dimension_semantics<parallel>], iteration_bounds = array<i64: 1>, scalar_prefetch = 0 : i64, scratch_operands = 0 : i64, tpu.core_type = #tpu.core_type<tc>, window_params = [{transform_indices = @transform_0, window_bounds = array<i64: 16, 32>}, {pipeline_mode = #tpu.pipeline_mode<synchronous>, transform_indices = @transform_1, window_bounds = array<i64: 16, 32>}, {transform_indices = @transform_2, window_bounds = array<i64: 16, 16>}]} {
    %c0 = arith.constant 0 : index
    %c0_0 = arith.constant 0 : index
    %0 = vector.load %arg1[%c0, %c0_0] : memref<16x32xf32, #tpu.memory_space<vmem>>, vector<16x32xf32>
    %c0_1 = arith.constant 0 : index
    %c0_2 = arith.constant 0 : index
    %1 = vector.load %arg2[%c0_1, %c0_2] : memref<16x32xf32, #tpu.memory_space<vmem>>, vector<16x32xf32>
    %cst = arith.constant dense<0.000000e+00> : vector<16x16xf32>
    %2 = tpu.matmul %0, %1, %cst {dimension_numbers = #tpu.dot_dimension_numbers<[1], [1], [0], [0], [0, 0, 1, 0], [], []>} : vector<16x32xf32>, vector<16x32xf32>, vector<16x16xf32> -> vector<16x16xf32>
    %3 = arith.negf %2 : vector<16x16xf32>
    %4 = math.exp %3 : vector<16x16xf32>
    %cst_3 = arith.constant 1.000000e+00 : f32
    %5 = vector.broadcast %cst_3 : f32 to vector<16x16xf32>
    %6 = arith.addf %5, %4 : vector<16x16xf32>
    %7 = arith.divf %5, %6 : vector<16x16xf32>
    %c0_4 = arith.constant 0 : index
    %c0_5 = arith.constant 0 : index
    %8 = vector.load %arg3[%c0_4, %c0_5] : memref<16x16xf32, #tpu.memory_space<vmem>>, vector<16x16xf32>
    tpu.vector_store %arg3[%c0_4, %c0_5], %7 {strides = array<i32>} : memref<16x16xf32, #tpu.memory_space<vmem>>, vector<16x16xf32>,
    return
  }
  func.func @transform_0(%arg0: i32) -> (i32, i32) {
    %c0_i32 = arith.constant 0 : i32
    %c0_i32_0 = arith.constant 0 : i32
    return %arg0, %c0_i32 : i32, i32
  }
  func.func @transform_1(%arg0: i32) -> (i32, i32) {
    %c0_i32 = arith.constant 0 : i32
    %c0_i32_0 = arith.constant 0 : i32
    %c0_i32_1 = arith.constant 0 : i32
    return %c0_i32, %c0_i32_0 : i32, i32
  }
  func.func @transform_2(%arg0: i32) -> (i32, i32) {
    %c0_i32 = arith.constant 0 : i32
    %c0_i32_0 = arith.constant 0 : i32
    return %arg0, %c0_i32 : i32, i32
  }
}

module attributes {stable_mosaic.version = 11 : i64} {
  func.func @_ec_topk_kernel(%arg0: i32, %arg1: memref<8x16xf32, #tpu.memory_space<vmem>>, %arg2: memref<8x2xi32, #tpu.memory_space<vmem>>, %arg3: memref<8x2xf32, #tpu.memory_space<vmem>>, %arg4: memref<8x16xf32, #tpu.memory_space<vmem>>) attributes {dimension_semantics = [#tpu.dimension_semantics<parallel>], iteration_bounds = array<i64: 2>, scalar_prefetch = 0 : i64, scratch_operands = 1 : i64, tpu.core_type = #tpu.core_type<tc>, window_params = [{transform_indices = @transform_0, window_bounds = array<i64: 8, 16>}, {transform_indices = @transform_1, window_bounds = array<i64: 8, 2>}, {transform_indices = @transform_2, window_bounds = array<i64: 8, 2>}]} {
    %c0 = arith.constant 0 : index
    %c0_0 = arith.constant 0 : index
    %0 = vector.load %arg1[%c0, %c0_0] : memref<8x16xf32, #tpu.memory_space<vmem>>, vector<8x16xf32>
    %c0_1 = arith.constant 0 : index
    %c0_2 = arith.constant 0 : index
    %1 = vector.load %arg4[%c0_1, %c0_2] : memref<8x16xf32, #tpu.memory_space<vmem>>, vector<8x16xf32>
    tpu.vector_store %arg4[%c0_1, %c0_2], %0 {strides = array<i32>} : memref<8x16xf32, #tpu.memory_space<vmem>>, vector<8x16xf32>,
    %2 = tpu.iota {dimensions = array<i32: 1>} : vector<8x16xi32>
    %3 = tpu.iota {dimensions = array<i32: 1>} : vector<8x2xi32>
    %c0_i32 = arith.constant 0 : i32
    %4 = vector.broadcast %c0_i32 : i32 to vector<8x2xi32>
    %cst = arith.constant 0.000000e+00 : f32
    %5 = vector.broadcast %cst : f32 to vector<8x2xf32>
    %c0_i32_3 = arith.constant 0 : i32
    %c2_i32 = arith.constant 2 : i32
    %6 = arith.addi %c0_i32_3, %c2_i32 : i32
    %c1_i32 = arith.constant 1 : i32
    %7:2 = scf.for %arg5 = %c0_i32_3 to %6 step %c1_i32 iter_args(%arg6 = %4, %arg7 = %5) -> (vector<8x2xi32>, vector<8x2xf32>)  : i32 {
      %c0_9 = arith.constant 0 : index
      %c0_10 = arith.constant 0 : index
      %10 = vector.load %arg4[%c0_9, %c0_10] : memref<8x16xf32, #tpu.memory_space<vmem>>, vector<8x16xf32>
      %cst_11 = arith.constant dense<0xFF800000> : vector<8xf32>
      %11 = vector.multi_reduction <maximumf>, %10, %cst_11 [1] : vector<8x16xf32> to vector<8xf32>
      %12 = vector.shape_cast %11 : vector<8xf32> to vector<8x1xf32>
      %13 = vector.broadcast %12 : vector<8x1xf32> to vector<8x16xf32>
      %14 = arith.cmpf oeq, %10, %13 : vector<8x16xf32>
      %c16_i32 = arith.constant 16 : i32
      %15 = vector.broadcast %c16_i32 : i32 to vector<8x16xi32>
      %16 = arith.select %14, %2, %15 : vector<8x16xi1>, vector<8x16xi32>
      %cst_12 = arith.constant dense<2147483647> : vector<8xi32>
      %17 = vector.multi_reduction <minsi>, %16, %cst_12 [1] : vector<8x16xi32> to vector<8xi32>
      %18 = vector.shape_cast %17 : vector<8xi32> to vector<8x1xi32>
      %19 = vector.broadcast %18 : vector<8x1xi32> to vector<8x16xi32>
      %20 = arith.cmpi eq, %16, %19 : vector<8x16xi32>
      %cst_13 = arith.constant 0xFF800000 : f32
      %21 = vector.broadcast %cst_13 : f32 to vector<8x16xf32>
      %22 = arith.select %20, %21, %10 : vector<8x16xi1>, vector<8x16xf32>
      %c0_14 = arith.constant 0 : index
      %c0_15 = arith.constant 0 : index
      %23 = vector.load %arg4[%c0_14, %c0_15] : memref<8x16xf32, #tpu.memory_space<vmem>>, vector<8x16xf32>
      tpu.vector_store %arg4[%c0_14, %c0_15], %22 {strides = array<i32>} : memref<8x16xf32, #tpu.memory_space<vmem>>, vector<8x16xf32>,
      %24 = vector.broadcast %arg5 : i32 to vector<8x2xi32>
      %25 = arith.cmpi eq, %3, %24 : vector<8x2xi32>
      %26 = vector.shape_cast %18 : vector<8x1xi32> to vector<8x1xi32>
      %27 = vector.broadcast %26 : vector<8x1xi32> to vector<8x2xi32>
      %28 = arith.select %25, %27, %arg6 : vector<8x2xi1>, vector<8x2xi32>
      %29 = vector.broadcast %arg5 : i32 to vector<8x2xi32>
      %30 = arith.cmpi eq, %3, %29 : vector<8x2xi32>
      %31 = vector.shape_cast %12 : vector<8x1xf32> to vector<8x1xf32>
      %32 = vector.broadcast %31 : vector<8x1xf32> to vector<8x2xf32>
      %33 = arith.select %30, %32, %arg7 : vector<8x2xi1>, vector<8x2xf32>
      scf.yield %28, %33 : vector<8x2xi32>, vector<8x2xf32>
    }
    %c2_i32_4 = arith.constant 2 : i32
    %c0_5 = arith.constant 0 : index
    %c0_6 = arith.constant 0 : index
    %8 = vector.load %arg2[%c0_5, %c0_6] : memref<8x2xi32, #tpu.memory_space<vmem>>, vector<8x2xi32>
    tpu.vector_store %arg2[%c0_5, %c0_6], %7#0 {strides = array<i32>} : memref<8x2xi32, #tpu.memory_space<vmem>>, vector<8x2xi32>,
    %c0_7 = arith.constant 0 : index
    %c0_8 = arith.constant 0 : index
    %9 = vector.load %arg3[%c0_7, %c0_8] : memref<8x2xf32, #tpu.memory_space<vmem>>, vector<8x2xf32>
    tpu.vector_store %arg3[%c0_7, %c0_8], %7#1 {strides = array<i32>} : memref<8x2xf32, #tpu.memory_space<vmem>>, vector<8x2xf32>,
    return
  }
  func.func @transform_0(%arg0: i32) -> (i32, i32) {
    %c0_i32 = arith.constant 0 : i32
    %c0_i32_0 = arith.constant 0 : i32
    return %arg0, %c0_i32 : i32, i32
  }
  func.func @transform_1(%arg0: i32) -> (i32, i32) {
    %c0_i32 = arith.constant 0 : i32
    %c0_i32_0 = arith.constant 0 : i32
    return %arg0, %c0_i32 : i32, i32
  }
  func.func @transform_2(%arg0: i32) -> (i32, i32) {
    %c0_i32 = arith.constant 0 : i32
    %c0_i32_0 = arith.constant 0 : i32
    return %arg0, %c0_i32 : i32, i32
  }
}

</mosaic_0001>

<llo_original>
// kernel: ec_moe_gate_forward.2
$region0: #{ec_moe_gate_forward.2}
  #allocation0 [shape = 'u32[]', space=smem, size = 0x4, offset = 0x4, fixed_abs, tag = 'smem constant byte address 0x4 - core index']
  #allocation1 [shape = 'u32[144,128]{1,0:T(1,128)}', space=vmem, size = 0x12000, scoped, tag = 'internal scratch']
  %s0 = inlined_call_operand.hbm [shape: f32[16,32], index: 0, kind: input, shape index: {}]
  %s1 = inlined_call_operand.hbm [shape: f32[16,32], index: 1, kind: input, shape index: {}]
  %s2 = inlined_call_operand.vmem [shape: f32[16,16], index: 2, kind: output, shape index: {}]
  %s3 = sld [smem:[#allocation0]]
  $region26: #{ec_moe_gate_forward.2} parent=0
    _
  %s5 = ssub.s32 1, %s3
  %s6 = scalar_select 0, %s5, %s3
  $region1: #{ec_moe_gate_forward.2} parent=0
    #allocation2 [shape = 'u8[8192]{0}', space=vmem, size = 0x2000, scoped, tag = 'input window, operand 0, single buffered']
    #allocation3 [shape = 's32[1]{0}', space=sflag, size = 0x4, scoped, tag = 'scoped memory for ec_moe_gate_forward.2']
    #allocation4 [shape = 'u8[8192]{0}', space=vmem, size = 0x2000, scoped, tag = 'input window, operand 1, single buffered']
    #allocation5 [shape = 's32[1]{0}', space=sflag, size = 0x4, scoped, tag = 'scoped memory for ec_moe_gate_forward.2']
    %7 = vsyncpa [#allocation3], 0
    %8 = vsyncpa [#allocation5], 0
    // Predicated region
    $region2: #{ec_moe_gate_forward.2} parent=1 // pred_check
      _
    $region3: #{ec_moe_gate_forward.2} parent=1 // pred_check_branch
      %10 = sbr.rel (0) target = $region5
    $region4: #{ec_moe_gate_forward.2} parent=1 // pred_region
      %s12 = ssub.s32 256, 256
      %13 = vsyncadd [#allocation3], %s12
      %s14 = sshll.u32 [#allocation2], 4
      %s15 = int_to_ptr.vmem [resolvable:$true] %s14
      %20 = dma.hbm_to_vmem [thread:$0]  %s0, 256, %s15, [#allocation3], 128, 128, 8
    $region5: #{ec_moe_gate_forward.2} parent=1 // pred_fallthru
      _
    // Predicated region
    $region6: #{ec_moe_gate_forward.2} parent=1 // pred_check
      _
    $region7: #{ec_moe_gate_forward.2} parent=1 // pred_check_branch
      %22 = sbr.rel (0) target = $region9
    $region8: #{ec_moe_gate_forward.2} parent=1 // pred_region
      %s24 = ssub.s32 256, 256
      %25 = vsyncadd [#allocation5], %s24
      %s26 = sshll.u32 [#allocation4], 4
      %s27 = int_to_ptr.vmem [resolvable:$true] %s26
      %32 = dma.hbm_to_vmem [thread:$0]  %s1, 256, %s27, [#allocation5], 128, 128, 8
    $region9: #{ec_moe_gate_forward.2} parent=1 // pred_fallthru
      _
    // Predicated region
    $region10: #{ec_moe_gate_forward.2} parent=1 // pred_check
      _
    $region11: #{ec_moe_gate_forward.2} parent=1 // pred_check_branch
      %34 = sbr.rel (0) target = $region13
    $region12: #{ec_moe_gate_forward.2} parent=1 // pred_region
      %35 = dma.done [#allocation3], 256
    $region13: #{ec_moe_gate_forward.2} parent=1 // pred_fallthru
      _
    // Predicated region
    $region14: #{ec_moe_gate_forward.2} parent=1 // pred_check
      _
    $region15: #{ec_moe_gate_forward.2} parent=1 // pred_check_branch
      %37 = sbr.rel (0) target = $region17
    $region16: #{ec_moe_gate_forward.2} parent=1 // pred_region
      %38 = dma.done [#allocation5], 256
    $region17: #{ec_moe_gate_forward.2} parent=1 // pred_fallthru
      _
    %v39 = vld [vmem:[#allocation2] sm:$0xff]
    %v40 = vld [vmem:[#allocation2 + $0x8] sm:$0xff]
    %v41 = vld [vmem:[#allocation4] sm:$0xff]
    %v42 = vld [vmem:[#allocation4 + $0x8] sm:$0xff]
    %vm43 = vcmask 261120
    %v45 = vsel %vm43, %v39, 0
    %v48 = vsel %vm43, %v40, 0
    %v51 = vsel %vm43, %v41, 0
    %v54 = vsel %vm43, %v42, 0
    %56 = vmatprep.subr.mxu0 0.0
    %57 = vmatpush1.xpose.msra.mxu0 %v51
    %58 = vmatprep.subr.mxu0 0.0
    %59 = vmatpush1.xpose.msra.mxu0 %v54
    %60 = vmatprep.subr.mxu0 0.0
    %61 = vmatpush1.xpose.msra.mxu0 0.0
    %62 = vmatprep.subr.mxu0 0.0
    %63 = vmatpush1.xpose.msra.mxu0 0.0
    %64 = vmatprep.subr.mxu0 0.0
    %65 = vmatpush1.xpose.msra.mxu0 0.0
    %66 = vmatprep.subr.mxu0 0.0
    %67 = vmatpush1.xpose.msra.mxu0 0.0
    %68 = vmatprep.subr.mxu0 0.0
    %69 = vmatpush1.xpose.msra.mxu0 0.0
    %70 = vmatprep.subr.mxu0 0.0
    %71 = vmatpush1.xpose.msra.mxu0 0.0
    %72 = vmatprep.subr.mxu0 0.0
    %73 = vmatpush1.xpose.msra.mxu0 0.0
    %74 = vmatprep.subr.mxu0 0.0
    %75 = vmatpush1.xpose.msra.mxu0 0.0
    %76 = vmatprep.subr.mxu0 0.0
    %77 = vmatpush1.xpose.msra.mxu0 0.0
    %78 = vmatprep.subr.mxu0 0.0
    %79 = vmatpush1.xpose.msra.mxu0 0.0
    %80 = vmatprep.subr.mxu0 0.0
    %81 = vmatpush1.xpose.msra.mxu0 0.0
    %82 = vmatprep.subr.mxu0 0.0
    %83 = vmatpush1.xpose.msra.mxu0 0.0
    %84 = vmatprep.subr.mxu0 0.0
    %85 = vmatpush1.xpose.msra.mxu0 0.0
    %86 = vmatprep.subr.mxu0 0.0
    %87 = vmatpush1.xpose.msra.mxu0 0.0
    %88 = vmatprep.subr.mxu0 0.0
    %89 = vmatpush1.xpose.msra.mxu0 0.0
    %90 = vmatprep.subr.mxu0 0.0
    %91 = vmatpush1.xpose.msra.mxu0 0.0
    %92 = vmatprep.subr.mxu0 0.0
    %93 = vmatpush1.xpose.msra.mxu0 0.0
    %94 = vmatprep.subr.mxu0 0.0
    %95 = vmatpush1.xpose.msra.mxu0 0.0
    %96 = vmatprep.subr.mxu0 0.0
    %97 = vmatpush1.xpose.msra.mxu0 0.0
    %98 = vmatprep.subr.mxu0 0.0
    %99 = vmatpush1.xpose.msra.mxu0 0.0
    %100 = vmatprep.subr.mxu0 0.0
    %101 = vmatpush1.xpose.msra.mxu0 0.0
    %102 = vmatprep.subr.mxu0 0.0
    %103 = vmatpush1.xpose.msra.mxu0 0.0
    %104 = vmatprep.subr.mxu0 0.0
    %105 = vmatpush1.xpose.msra.mxu0 0.0
    %106 = vmatprep.subr.mxu0 0.0
    %107 = vmatpush1.xpose.msra.mxu0 0.0
    %108 = vmatprep.subr.mxu0 0.0
    %109 = vmatpush1.xpose.msra.mxu0 0.0
    %110 = vmatprep.subr.mxu0 0.0
    %111 = vmatpush1.xpose.msra.mxu0 0.0
    %112 = vmatprep.subr.mxu0 0.0
    %113 = vmatpush1.xpose.msra.mxu0 0.0
    %114 = vmatprep.subr.mxu0 0.0
    %115 = vmatpush1.xpose.msra.mxu0 0.0
    %116 = vmatprep.subr.mxu0 0.0
    %117 = vmatpush1.xpose.msra.mxu0 0.0
    %118 = vmatprep.subr.mxu0 0.0
    %119 = vmatpush1.xpose.msra.mxu0 0.0
    %120 = vmatprep.mubr.f32.mxu0 0.0
    %121 = vmatmul.mubr.f32.gmra.mrb[0].mxu0 %v45
    %v122 = vpop.f32.mrb[0].mxu0
    %v123 = vadd.f32 0.0, %v122
    %v124 = vpop.f32.mrb[0].mxu0
    %125 = vmatprep.mubr.f32.mxu0 0.0
    %126 = vmatmul.mubr.f32.gmra.mrb[0].mxu0 %v48
    %v127 = vpop.f32.mrb[0].mxu0
    %v128 = vadd.f32 0.0, %v127
    %v129 = vpop.f32.mrb[0].mxu0
    %130 = vdwg.mxu0
    %v131 = vxor.u32 %v123, 2147483648
    %v132 = vxor.u32 %v128, 2147483648
    %v133 = vmul.f32 %v131, 1.442695
    %v134 = vpow.pop %v133
    %v135 = vmul.f32 %v132, 1.442695
    %v136 = vpow.pop %v135
    %v137 = vadd.f32 %v134, 1.0
    %v138 = vadd.f32 %v136, 1.0
    %v139 = vrcp.pop %v137
    %v140 = vmul.f32 1.0, %v139
    %v141 = vrcp.pop %v138
    %v142 = vmul.f32 1.0, %v141
    %vm143 = vcmask 130048
    %144 = vst.msk [vmem:[%s2] sm:$0xff] %vm143, %v140
    %145 = vst.msk [vmem:[%s2 + $0x8] sm:$0xff] %vm143, %v142
    // Predicated region
    $region18: #{ec_moe_gate_forward.2} parent=1 // pred_check
      _
    $region19: #{ec_moe_gate_forward.2} parent=1 // pred_check_branch
      %147 = sbr.rel (0) target = $region21
    $region20: #{ec_moe_gate_forward.2} parent=1 // pred_region
      _
    $region21: #{ec_moe_gate_forward.2} parent=1 // pred_fallthru
      _
    // Predicated region
    $region22: #{ec_moe_gate_forward.2} parent=1 // pred_check
      _
    $region23: #{ec_moe_gate_forward.2} parent=1 // pred_check_branch
      %149 = sbr.rel (0) target = $region25
    $region24: #{ec_moe_gate_forward.2} parent=1 // pred_region
      _
    $region25: #{ec_moe_gate_forward.2} parent=1 // pred_fallthru
      _
    %150 = vsyncpa [#allocation3], 1
    %151 = vsyncpa [#allocation5], 1

// kernel: ec_moe_gate_forward.3
$region0: #{ec_moe_gate_forward.3}
  #allocation0 [shape = 'u32[]', space=smem, size = 0x4, offset = 0x4, fixed_abs, tag = 'smem constant byte address 0x4 - core index']
  #allocation1 [shape = 'u32[144,128]{1,0:T(1,128)}', space=vmem, size = 0x12000, scoped, tag = 'internal scratch']
  #allocation2 [shape = 'f32[8,16]{1,0:T(8,128)}', space=vmem, size = 0x1000, scoped, tag = 'scratch operand']
  %s0 = inlined_call_operand.vmem [shape: f32[16,16], index: 0, kind: input, shape index: {}]
  %s1 = inlined_call_operand.vmem [shape: s32[16,2], index: 1, kind: output, shape index: {0}]
  %s2 = inlined_call_operand.vmem [shape: f32[16,2], index: 2, kind: output, shape index: {1}]
  %3 = xla_tuple %s1, %s2
  %s4 = sld [smem:[#allocation0]]
  $region52: #{ec_moe_gate_forward.3} parent=0
    _
  %s6 = ssub.s32 1, %s4
  %s7 = scalar_select 0, %s6, %s4
  loop: start=0, step=1, limit=4
  $region2: #{ec_moe_gate_forward.3} parent=0 // loop_pre_header
    _
  $region3: #{ec_moe_gate_forward.3} parent=0 // loop_header
    %s9 = sphi 0, %s13
    %p10 = scmp.ge.s32.totalorder %s9, 4
    %s19 = sphi 0, %s21
    %s22 = sphi 0, %s19
    %s23 = sphi 0, %s22
    %s39 = sphi 0, %s23
    %s45 = sphi 0, %s47
    %s48 = sphi 0, %s45
    %s49 = sphi 0, %s48
    %s65 = sphi 0, %s49
    %s71 = sphi 0, %s73
    %s74 = sphi 0, %s71
    %s75 = sphi 0, %s74
    %s91 = sphi 0, %s75
  $region4: #{ec_moe_gate_forward.3} parent=0 // loop_header_branch
    %12 = sbr.rel (%p10) target = $region8
  $region5: #{ec_moe_gate_forward.3} parent=0 // loop_body
    %s14 = ssub.s32 %s9, 1
    %s15 = ssub.s32 %s9, 2
    %s16 = sadd.s32 %s9, 1
    %s17 = ssub.s32 %s9, %s16
    %p18 = scmp.eq.s32.totalorder %s17, 0
    %s20 = sadd.s32 %s19, 1
    %s21 = scalar_select %p18, %s19, %s20
    %p24 = pneg %p18
    %p25 = scmp.eq.s32.totalorder %s9, 1
    %p26 = por %p24, %p25
    %p27 = scmp.ne.s32.totalorder %s19, %s22
    %p28 = scmp.eq.s32.totalorder %s9, 0
    %p29 = por %p27, %p28
    %p30 = scmp.ne.s32.totalorder %s19, %s22
    %p31 = scmp.eq.s32.totalorder %s14, 1
    %p32 = por %p30, %p31
    %p33 = scmp.ne.s32.totalorder %s22, %s23
    %p34 = scmp.eq.s32.totalorder %s14, 0
    %p35 = por %p33, %p34
    %p36 = scmp.ne.s32.totalorder %s22, %s23
    %p37 = scmp.eq.s32.totalorder %s15, 1
    %p38 = por %p36, %p37
    %p40 = scmp.ne.s32.totalorder %s23, %s39
    %p41 = scmp.eq.s32.totalorder %s15, 0
    %p42 = por %p40, %p41
    %s43 = ssub.s32 %s9, %s16
    %p44 = scmp.eq.s32.totalorder %s43, 0
    %s46 = sadd.s32 %s45, 1
    %s47 = scalar_select %p44, %s45, %s46
    %p50 = pneg %p44
    %p51 = scmp.eq.s32.totalorder %s9, 1
    %p52 = por %p50, %p51
    %p53 = scmp.ne.s32.totalorder %s45, %s48
    %p54 = scmp.eq.s32.totalorder %s9, 0
    %p55 = por %p53, %p54
    %p56 = scmp.ne.s32.totalorder %s45, %s48
    %p57 = scmp.eq.s32.totalorder %s14, 1
    %p58 = por %p56, %p57
    %p59 = scmp.ne.s32.totalorder %s48, %s49
    %p60 = scmp.eq.s32.totalorder %s14, 0
    %p61 = por %p59, %p60
    %p62 = scmp.ne.s32.totalorder %s48, %s49
    %p63 = scmp.eq.s32.totalorder %s15, 1
    %p64 = por %p62, %p63
    %p66 = scmp.ne.s32.totalorder %s49, %s65
    %p67 = scmp.eq.s32.totalorder %s15, 0
    %p68 = por %p66, %p67
    %s69 = ssub.s32 %s9, %s16
    %p70 = scmp.eq.s32.totalorder %s69, 0
    %s72 = sadd.s32 %s71, 1
    %s73 = scalar_select %p70, %s71, %s72
    %p76 = pneg %p70
    %p77 = scmp.eq.s32.totalorder %s9, 1
    %p78 = por %p76, %p77
    %p79 = scmp.ne.s32.totalorder %s71, %s74
    %p80 = scmp.eq.s32.totalorder %s9, 0
    %p81 = por %p79, %p80
    %p82 = scmp.ne.s32.totalorder %s71, %s74
    %p83 = scmp.eq.s32.totalorder %s14, 1
    %p84 = por %p82, %p83
    %p85 = scmp.ne.s32.totalorder %s74, %s75
    %p86 = scmp.eq.s32.totalorder %s14, 0
    %p87 = por %p85, %p86
    %p88 = scmp.ne.s32.totalorder %s74, %s75
    %p89 = scmp.eq.s32.totalorder %s15, 1
    %p90 = por %p88, %p89
    %p92 = scmp.ne.s32.totalorder %s75, %s91
    %p93 = scmp.eq.s32.totalorder %s15, 0
    %p94 = por %p92, %p93
    %p95 = scmp.le.s32.totalorder 1, %s9
    %p96 = scmp.lt.s32.totalorder %s9, 3
    %p97 = pnand %p95, %p96
    %p98 = pneg %p97
    // Predicated region
    $region9: #{ec_moe_gate_forward.3} parent=5 // pred_check
      _
    $region10: #{ec_moe_gate_forward.3} parent=5 // pred_check_branch
      %100 = sbr.rel (%p97) target = $region12
    $region11: #{ec_moe_gate_forward.3} parent=5 // pred_region
      %s101 = ssub.s32 %s9, 1
    $region12: #{ec_moe_gate_forward.3} parent=5 // pred_fallthru
      _
    %p102 = scmp.lt.s32.totalorder %s9, 2
    // Predicated region
    $region13: #{ec_moe_gate_forward.3} parent=5 // pred_check
      %p103 = pneg %p102
    $region14: #{ec_moe_gate_forward.3} parent=5 // pred_check_branch
      %105 = sbr.rel (%p103) target = $region16
    $region15: #{ec_moe_gate_forward.3} parent=5 // pred_region
      // Predicated region
      $region17: #{ec_moe_gate_forward.3} parent=15 // pred_check
        %p106 = pneg %p29
      $region18: #{ec_moe_gate_forward.3} parent=15 // pred_check_branch
        %108 = sbr.rel (%p106) target = $region20
      $region19: #{ec_moe_gate_forward.3} parent=15 // pred_region
        %p109 = scmp.lt.s32.totalorder %s9, 1
        %s110 = scalar_select %p109, %s9, 1
        %s111 = smul.addr %s110, 8
        %s112 = scalar_lea.vmem %s0, %s111
      $region20: #{ec_moe_gate_forward.3} parent=15 // pred_fallthru
        _
    $region16: #{ec_moe_gate_forward.3} parent=5 // pred_fallthru
      _
    %p113 = scmp.le.s32.totalorder 1, %s9
    %p114 = scmp.lt.s32.totalorder %s9, 3
    %p115 = pnand %p113, %p114
    %p116 = pneg %p115
    // Predicated region
    $region21: #{ec_moe_gate_forward.3} parent=5 // pred_check
      _
    $region22: #{ec_moe_gate_forward.3} parent=5 // pred_check_branch
      %118 = sbr.rel (%p115) target = $region24
    $region23: #{ec_moe_gate_forward.3} parent=5 // pred_region
      %s119 = ssub.s32 %s9, 1
      %p120 = scmp.lt.s32.totalorder %s14, 1
      %s121 = scalar_select %p120, %s14, 1
      %s122 = smul.addr %s121, 8
      %s123 = scalar_lea.vmem %s0, %s122
      %p124 = pneg %p35
      %p125 = pneg %p32
      %p126 = pneg %p61
      %p127 = pneg %p58
      %p128 = scmp.lt.s32.totalorder %s14, 1
      %s129 = scalar_select %p128, %s14, 1
      %s130 = smul.addr %s129, 8
      %s131 = scalar_lea.vmem %s1, %s130
      %p132 = pneg %p87
      %p133 = pneg %p84
      %p134 = scmp.lt.s32.totalorder %s14, 1
      %s135 = scalar_select %p134, %s14, 1
      %s136 = smul.addr %s135, 8
      %s137 = scalar_lea.vmem %s2, %s136
      %p138 = scmp.lt.s32.totalorder %s14, 1
      %s139 = scalar_select %p138, %s14, 1
      %s140 = smul.addr %s139, 8
      %s141 = scalar_lea.vmem %s0, %s140
      %p142 = scmp.lt.s32.totalorder %s14, 1
      %s143 = scalar_select %p142, %s14, 1
      %s144 = smul.addr %s143, 8
      %s145 = scalar_lea.vmem %s1, %s144
      %p146 = scmp.lt.s32.totalorder %s14, 1
      %s147 = scalar_select %p146, %s14, 1
      %s148 = smul.addr %s147, 8
      %s149 = scalar_lea.vmem %s2, %s148
      %v150 = vld [vmem:[%s141] sm:$0xff]
      %vm151 = vcmask 130048
      %152 = vst.msk [vmem:[#allocation2] sm:$0xff] %vm151, %v150
      %v153 = vlaneseq
      %v154 = vand.u32 %v153, 127
      loop: start=0, step=1, limit=2
      $region25: #{ec_moe_gate_forward.3} parent=23 // loop_pre_header
        _
      $region26: #{ec_moe_gate_forward.3} parent=23 // loop_header
        %s156 = sphi 0, %s160
        %p157 = scmp.ge.s32.totalorder %s156, 2
        %v161 = vphi 0, %v189
        %v162 = vphi 0.0, %v190
      $region27: #{ec_moe_gate_forward.3} parent=23 // loop_header_branch
        %159 = sbr.rel (%p157) target = $region31
      $region28: #{ec_moe_gate_forward.3} parent=23 // loop_body
        %v163 = vld [vmem:[#allocation2] sm:$0xff]
        %v164 = vsel %vm151, %v163, -inf
        %165 = vmax.xlane.f32.xlu0 %v164
        %v166 = vpop.xlane.xlu0 %165
        %vm167 = vcmp.eq.f32.partialorder %v163, %v166
        %v168 = vsel %vm167, %v154, 16
        %v169 = vsel %vm151, %v168, 2147483647
        %v170 = vand.u32 %v169, 65535
        %v171 = vshra.s32 %v169, 16
        %v172 = vcvt.s32.f32 %v170
        %v173 = vcvt.s32.f32 %v171
        %174 = vmin.xlane.f32.xlu0 %v173
        %v175 = vpop.xlane.xlu0 %174
        %vm176 = vcmp.eq.f32.partialorder %v173, %v175
        %v177 = vsel %vm176, %v172, inf
        %178 = vmin.xlane.f32.xlu0 %v177
        %v179 = vpop.xlane.xlu0 %178
        %v180 = vcvt.f32.s32 %v179
        %v181 = vcvt.f32.s32 %v175
        %v182 = vshll.u32 %v181, 16
        %v183 = vadd.s32 %v182, %v180
        %vm184 = vcmp.eq.s32.totalorder %v168, %v183
        %v185 = vsel %vm184, -inf, %v163
        %186 = vst.msk [vmem:[#allocation2] sm:$0xff] %vm151, %v185
        %v187 = vstv %s156
        %vm188 = vcmp.eq.s32.totalorder %v154, %v187
        %v189 = vsel %vm188, %v183, %v161
        %v190 = vsel %vm188, %v166, %v162
      $region29: #{ec_moe_gate_forward.3} parent=23 // loop_footer
        %s160 = sadd.s32 1, %s156
      $region30: #{ec_moe_gate_forward.3} parent=23 // loop_footer_branch
        %155 = sbr.rel target = $region26
      $region31: #{ec_moe_gate_forward.3} parent=23 // loop_exit
        _
      %vm191 = vcmask 15360
      %192 = vst.msk [vmem:[%s145] sm:$0xff] %vm191, %v161
      %193 = vst.msk [vmem:[%s149] sm:$0xff] %vm191, %v162
      %p194 = scmp.lt.s32.totalorder %s14, 1
      %s195 = scalar_select %p194, %s14, 1
      %s196 = smul.addr %s195, 8
      %s197 = scalar_lea.vmem %s1, %s196
      %p198 = scmp.lt.s32.totalorder %s14, 1
      %s199 = scalar_select %p198, %s14, 1
      %s200 = smul.addr %s199, 8
      %s201 = scalar_lea.vmem %s2, %s200
      // Predicated region
      $region32: #{ec_moe_gate_forward.3} parent=23 // pred_check
        %p202 = pneg %p58
      $region33: #{ec_moe_gate_forward.3} parent=23 // pred_check_branch
        %204 = sbr.rel (%p202) target = $region35
      $region34: #{ec_moe_gate_forward.3} parent=23 // pred_region
        _
      $region35: #{ec_moe_gate_forward.3} parent=23 // pred_fallthru
        _
      // Predicated region
      $region36: #{ec_moe_gate_forward.3} parent=23 // pred_check
        %p205 = pneg %p84
      $region37: #{ec_moe_gate_forward.3} parent=23 // pred_check_branch
        %207 = sbr.rel (%p205) target = $region39
      $region38: #{ec_moe_gate_forward.3} parent=23 // pred_region
        _
      $region39: #{ec_moe_gate_forward.3} parent=23 // pred_fallthru
        _
    $region24: #{ec_moe_gate_forward.3} parent=5 // pred_fallthru
      _
    %p208 = scmp.le.s32.totalorder 2, %s9
    // Predicated region
    $region40: #{ec_moe_gate_forward.3} parent=5 // pred_check
      %p209 = pneg %p208
    $region41: #{ec_moe_gate_forward.3} parent=5 // pred_check_branch
      %211 = sbr.rel (%p209) target = $region43
    $region42: #{ec_moe_gate_forward.3} parent=5 // pred_region
      %s212 = ssub.s32 %s9, 2
      // Predicated region
      $region44: #{ec_moe_gate_forward.3} parent=42 // pred_check
        %p213 = pneg %p64
      $region45: #{ec_moe_gate_forward.3} parent=42 // pred_check_branch
        %215 = sbr.rel (%p213) target = $region47
      $region46: #{ec_moe_gate_forward.3} parent=42 // pred_region
        %p216 = scmp.lt.s32.totalorder %s15, 1
        %s217 = scalar_select %p216, %s15, 1
        %s218 = smul.addr %s217, 8
        %s219 = scalar_lea.vmem %s1, %s218
      $region47: #{ec_moe_gate_forward.3} parent=42 // pred_fallthru
        _
      // Predicated region
      $region48: #{ec_moe_gate_forward.3} parent=42 // pred_check
        %p220 = pneg %p90
      $region49: #{ec_moe_gate_forward.3} parent=42 // pred_check_branch
        %222 = sbr.rel (%p220) target = $region51
      $region50: #{ec_moe_gate_forward.3} parent=42 // pred_region
        %p223 = scmp.lt.s32.totalorder %s15, 1
        %s224 = scalar_select %p223, %s15, 1
        %s225 = smul.addr %s224, 8
        %s226 = scalar_lea.vmem %s2, %s225
      $region51: #{ec_moe_gate_forward.3} parent=42 // pred_fallthru
        _
    $region43: #{ec_moe_gate_forward.3} parent=5 // pred_fallthru
      _
  $region6: #{ec_moe_gate_forward.3} parent=0 // loop_footer
    %s13 = sadd.s32 1, %s9
  $region7: #{ec_moe_gate_forward.3} parent=0 // loop_footer_branch
    %8 = sbr.rel target = $region3
  $region8: #{ec_moe_gate_forward.3} parent=0 // loop_exit
    _

</llo_original>
